<compile_context>
chip_gen: v6e
topology: v6e:2x2x1
jax: 0.10.0
libtpu: 0.0.40
codegen_flags: <defaults>
</compile_context>

<pallas_src>
import jax
import jax.numpy as jnp
from jax.experimental import pallas as pl
from jax.experimental.pallas import tpu as pltpu


_LANES = 512            # lane-dense last dim (multiple of 128)
_MAX_TILE_ROWS = 1024   # (1024, 512) f32 tile = 2 MiB per stream
_PALLAS_MIN_ELEMS = 1024  # below this, plain fused XLA wins


def _round_up(x: int, m: int) -> int:
    return ((x + m - 1) // m) * m


def _dc_kernel(coef_ref, in1_ref, in2_ref, out1_ref, out2_ref):
    # coef_ref is a (2,) f32 SMEM array: [t, k], precomputed in the wrapper.
    t = coef_ref[0]
    k = coef_ref[1]
    x1 = in1_ref[...]
    x2 = in2_ref[...]
    out1_ref[...] = (t * x1 + k * x2).astype(out1_ref.dtype)
    out2_ref[...] = (k * x1 + t * x2).astype(out2_ref.dtype)


def _coeffs(splitting_ratio):
    kappa = jnp.clip(splitting_ratio.reshape(()).astype(jnp.float32), 0.01, 0.99)
    t = jnp.sqrt(1.0 - kappa)
    k = jnp.sqrt(kappa)
    return t, k


def directional_coupler(input_1, input_2, splitting_ratio, *,
                        tile_rows: int = _MAX_TILE_ROWS,
                        lanes: int = _LANES):
    """Directional coupler forward pass.

    input_1, input_2: [batch, n_wavelengths] arrays (any float dtype).
    splitting_ratio:  shape (1,) learnable parameter.
    Returns (output_1, output_2) with PyTorch forward() semantics.
    """
    assert input_1.shape == input_2.shape
    orig_shape = input_1.shape
    dtype = input_1.dtype
    total = int(input_1.size)

    t, k = _coeffs(splitting_ratio)

    # Tiny inputs: fused XLA elementwise is faster than any pallas_call launch.
    if total < _PALLAS_MIN_ELEMS:
        out1 = (t * input_1 + k * input_2).astype(dtype)
        out2 = (k * input_1 + t * input_2).astype(dtype)
        return out1, out2

    # --- layout plumbing: flatten to a lane-dense [rows, lanes] slab -----------
    rows = pl.cdiv(total, lanes)
    rows8 = _round_up(rows, 8)                       # sublane alignment
    tr = _round_up(max(8, min(tile_rows, rows8)), 8)  # tile rows (multiple of 8)
    rows_pad = _round_up(rows8, tr)
    pad = rows_pad * lanes - total

    x1 = jnp.pad(input_1.reshape(-1), (0, pad)).reshape(rows_pad, lanes)
    x2 = jnp.pad(input_2.reshape(-1), (0, pad)).reshape(rows_pad, lanes)
    coeffs = jnp.stack([t, k]).astype(jnp.float32)

    grid = (rows_pad // tr,)
    out_sds = jax.ShapeDtypeStruct((rows_pad, lanes), dtype)

    out1p, out2p = pl.pallas_call(
        _dc_kernel,
        out_shape=(out_sds, out_sds),
        grid=grid,
        in_specs=[
            pl.BlockSpec(memory_space=pltpu.MemorySpace.SMEM),  # [t, k] scalars
            pl.BlockSpec((tr, lanes), lambda i: (i, 0)),        # input_1 slab
            pl.BlockSpec((tr, lanes), lambda i: (i, 0)),        # input_2 slab
        ],
        out_specs=(
            pl.BlockSpec((tr, lanes), lambda i: (i, 0)),
            pl.BlockSpec((tr, lanes), lambda i: (i, 0)),
        ),
        compiler_params=pltpu.CompilerParams(
            dimension_semantics=("parallel",),      # shard across v7x's 2 TCs
            vmem_limit_bytes=48 * 1024 * 1024,      # headroom; usage is ~16 MiB
        ),
    )(coeffs, x1, x2)

    out1 = out1p.reshape(-1)[:total].reshape(orig_shape)
    out2 = out2p.reshape(-1)[:total].reshape(orig_shape)
    return out1, out2


if __name__ == "__main__":
    key = jax.random.PRNGKey(0)
    k1, k2, k3, k4 = jax.random.split(key, 4)

    # deterministic parameter init, matching module __init__ defaults
    splitting_ratio = jnp.array([0.5], dtype=jnp.float32)
    phase_offset = jnp.zeros((1,), dtype=jnp.float32)  # unused in forward (parity only)

    def reference(x1, x2, ratio):
        kappa = jnp.clip(ratio, 0.01, 0.99)
        t = jnp.sqrt(1.0 - kappa)
        k = jnp.sqrt(kappa)
        return t * x1 + k * x2, k * x1 + t * x2

    # Case 1: tiny [2, 8] input -> plain-JAX fast path (as the module spec shows)
    a1 = jax.random.normal(k1, (2, 8), dtype=jnp.float32)
    a2 = jax.random.normal(k2, (2, 8), dtype=jnp.float32)
    o1, o2 = directional_coupler(a1, a2, splitting_ratio)
    jax.block_until_ready((o1, o2))
    r1, r2 = reference(a1, a2, splitting_ratio)
    assert jnp.allclose(o1, r1, atol=1e-6) and jnp.allclose(o2, r2, atol=1e-6)

    # Case 2: Pallas path, single lane-dense tile
    b1 = jax.random.normal(k3, (256, 8), dtype=jnp.float32)
    b2 = jax.random.normal(k4, (256, 8), dtype=jnp.float32)
    o1, o2 = directional_coupler(b1, b2, splitting_ratio)
    jax.block_until_ready((o1, o2))
    r1, r2 = reference(b1, b2, splitting_ratio)
    assert jnp.allclose(o1, r1, atol=1e-6) and jnp.allclose(o2, r2, atol=1e-6)

    # Case 3: Pallas path, multi-step pipelined grid (small tile to exercise it)
    c1 = jax.random.normal(k1, (2048, 8), dtype=jnp.float32)
    c2 = jax.random.normal(k2, (2048, 8), dtype=jnp.float32)
    o1, o2 = directional_coupler(c1, c2, splitting_ratio, tile_rows=8)
    jax.block_until_ready((o1, o2))
    r1, r2 = reference(c1, c2, splitting_ratio)
    assert jnp.allclose(o1, r1, atol=1e-6) and jnp.allclose(o2, r2, atol=1e-6)

    print("KERNEL_OK")
</pallas_src>

<mosaic_0001>
module attributes {stable_mosaic.version = 11 : i64} {
  func.func @_dc_kernel(%arg0: i32, %arg1: memref<2xf32, #tpu.memory_space<smem>>, %arg2: memref<8x512xf32, #tpu.memory_space<vmem>>, %arg3: memref<8x512xf32, #tpu.memory_space<vmem>>, %arg4: memref<8x512xf32, #tpu.memory_space<vmem>>, %arg5: memref<8x512xf32, #tpu.memory_space<vmem>>) attributes {dimension_semantics = [#tpu.dimension_semantics<parallel>], iteration_bounds = array<i64: 1>, scalar_prefetch = 0 : i64, scratch_operands = 0 : i64, tpu.core_type = #tpu.core_type<tc>, window_params = [{transform_indices = @transform_0, window_bounds = array<i64: 2>}, {transform_indices = @transform_1, window_bounds = array<i64: 8, 512>}, {transform_indices = @transform_2, window_bounds = array<i64: 8, 512>}, {transform_indices = @transform_3, window_bounds = array<i64: 8, 512>}, {transform_indices = @transform_4, window_bounds = array<i64: 8, 512>}]} {
    %c0 = arith.constant 0 : index
    %0 = memref.load %arg1[%c0] : memref<2xf32, #tpu.memory_space<smem>>
    %c1 = arith.constant 1 : index
    %1 = memref.load %arg1[%c1] : memref<2xf32, #tpu.memory_space<smem>>
    %c0_0 = arith.constant 0 : index
    %c0_1 = arith.constant 0 : index
    %2 = vector.load %arg2[%c0_0, %c0_1] : memref<8x512xf32, #tpu.memory_space<vmem>>, vector<8x512xf32>
    %c0_2 = arith.constant 0 : index
    %c0_3 = arith.constant 0 : index
    %3 = vector.load %arg3[%c0_2, %c0_3] : memref<8x512xf32, #tpu.memory_space<vmem>>, vector<8x512xf32>
    %4 = vector.broadcast %0 : f32 to vector<8x512xf32>
    %5 = arith.mulf %4, %2 : vector<8x512xf32>
    %6 = vector.broadcast %1 : f32 to vector<8x512xf32>
    %7 = arith.mulf %6, %3 : vector<8x512xf32>
    %8 = arith.addf %5, %7 : vector<8x512xf32>
    %c0_4 = arith.constant 0 : index
    %c0_5 = arith.constant 0 : index
    %9 = vector.load %arg4[%c0_4, %c0_5] : memref<8x512xf32, #tpu.memory_space<vmem>>, vector<8x512xf32>
    tpu.vector_store %arg4[%c0_4, %c0_5], %8 {strides = array<i32>} : memref<8x512xf32, #tpu.memory_space<vmem>>, vector<8x512xf32>,
    %10 = vector.broadcast %1 : f32 to vector<8x512xf32>
    %11 = arith.mulf %10, %2 : vector<8x512xf32>
    %12 = vector.broadcast %0 : f32 to vector<8x512xf32>
    %13 = arith.mulf %12, %3 : vector<8x512xf32>
    %14 = arith.addf %11, %13 : vector<8x512xf32>
    %c0_6 = arith.constant 0 : index
    %c0_7 = arith.constant 0 : index
    %15 = vector.load %arg5[%c0_6, %c0_7] : memref<8x512xf32, #tpu.memory_space<vmem>>, vector<8x512xf32>
    tpu.vector_store %arg5[%c0_6, %c0_7], %14 {strides = array<i32>} : memref<8x512xf32, #tpu.memory_space<vmem>>, vector<8x512xf32>,
    return
  }
  func.func @transform_0(%arg0: i32) -> i32 {
    %c0_i32 = arith.constant 0 : i32
    %c0_i32_0 = arith.constant 0 : i32
    return %c0_i32 : i32
  }
  func.func @transform_1(%arg0: i32) -> (i32, i32) {
    %c0_i32 = arith.constant 0 : i32
    %c0_i32_0 = arith.constant 0 : i32
    return %arg0, %c0_i32 : i32, i32
  }
  func.func @transform_2(%arg0: i32) -> (i32, i32) {
    %c0_i32 = arith.constant 0 : i32
    %c0_i32_0 = arith.constant 0 : i32
    return %arg0, %c0_i32 : i32, i32
  }
  func.func @transform_3(%arg0: i32) -> (i32, i32) {
    %c0_i32 = arith.constant 0 : i32
    %c0_i32_0 = arith.constant 0 : i32
    return %arg0, %c0_i32 : i32, i32
  }
  func.func @transform_4(%arg0: i32) -> (i32, i32) {
    %c0_i32 = arith.constant 0 : i32
    %c0_i32_0 = arith.constant 0 : i32
    return %arg0, %c0_i32 : i32, i32
  }
}

</mosaic_0001>

<llo_original>
// kernel: tpu_custom_call.1
$region0: #{tpu_custom_call.1}
  #allocation0 [shape = 'u32[]', space=smem, size = 0x4, offset = 0x4, fixed_abs, tag = 'smem constant byte address 0x4 - core index']
  #allocation1 [shape = 'u32[144,128]{1,0:T(1,128)}', space=vmem, size = 0x12000, scoped, tag = 'internal scratch']
  %s0 = inlined_call_operand.hbm [shape: f32[2], index: 0, kind: input, shape index: {}]
  %s1 = inlined_call_operand.hbm [shape: f32[8,512], index: 1, kind: input, shape index: {}]
  %s2 = inlined_call_operand.hbm [shape: f32[8,512], index: 2, kind: input, shape index: {}]
  %s3 = inlined_call_operand.hbm [shape: f32[8,512], index: 3, kind: output, shape index: {0}]
  %s4 = inlined_call_operand.hbm [shape: f32[8,512], index: 4, kind: output, shape index: {1}]
  %5 = xla_tuple %s3, %s4
  %s6 = sld [smem:[#allocation0]]
  $region42: #{tpu_custom_call.1} parent=0
    _
  %s8 = ssub.s32 1, %s6
  %s9 = scalar_select 0, %s8, %s6
  $region1: #{tpu_custom_call.1} parent=0
    #allocation2 [shape = 'u8[512]{0}', space=smem, size = 0x200, scoped, tag = 'input window, operand 0, single buffered']
    #allocation3 [shape = 's32[1]{0}', space=sflag, size = 0x4, scoped, tag = 'scoped memory for tpu_custom_call.1']
    #allocation4 [shape = 's32[1]{0}', space=sflag, size = 0x4, scoped, tag = 'scoped memory for tpu_custom_call.1']
    #allocation5 [shape = 's32[1]{0}', space=sflag, size = 0x4, scoped, tag = 'scoped memory for tpu_custom_call.1']
    #allocation6 [shape = 'u8[16384]{0}', space=vmem, size = 0x4000, scoped, tag = 'input window, operand 1, single buffered']
    #allocation7 [shape = 'u8[16384]{0}', space=vmem, size = 0x4000, scoped, tag = 'input window, operand 2, single buffered']
    #allocation8 [shape = 's32[1]{0}', space=sflag, size = 0x4, scoped, tag = 'scoped memory for tpu_custom_call.1']
    #allocation9 [shape = 'u8[16384]{0}', space=vmem, size = 0x4000, scoped, tag = 'output window, operand 0, single buffered']
    #allocation10 [shape = 'u8[16384]{0}', space=vmem, size = 0x4000, scoped, tag = 'output window, operand 1, single buffered']
    #allocation11 [shape = 's32[1]{0}', space=sflag, size = 0x4, scoped, tag = 'scoped memory for tpu_custom_call.1']
    %10 = vsyncpa [#allocation5], 0
    %11 = vsyncpa [#allocation3], 0
    %12 = vsyncpa [#allocation8], 0
    %13 = vsyncpa [#allocation4], 0
    %14 = vsyncpa [#allocation11], 0
    // Predicated region
    $region2: #{tpu_custom_call.1} parent=1 // pred_check
      _
    $region3: #{tpu_custom_call.1} parent=1 // pred_check_branch
      %16 = sbr.rel (0) target = $region5
    $region4: #{tpu_custom_call.1} parent=1 // pred_region
      %s18 = ssub.s32 16, 16
      %19 = vsyncadd [#allocation5], %s18
      %22 = dma.hbm_to_smem %s0, 16, [#allocation2], [#allocation5]
    $region5: #{tpu_custom_call.1} parent=1 // pred_fallthru
      _
    // Predicated region
    $region6: #{tpu_custom_call.1} parent=1 // pred_check
      _
    $region7: #{tpu_custom_call.1} parent=1 // pred_check_branch
      %24 = sbr.rel (0) target = $region9
    $region8: #{tpu_custom_call.1} parent=1 // pred_region
      %s26 = ssub.s32 512, 512
      %27 = vsyncadd [#allocation3], %s26
      %s29 = sshll.u32 [#allocation6], 4
      %s30 = int_to_ptr.vmem [resolvable:$true] %s29
      %32 = dma.hbm_to_vmem [thread:$0]  %s1, 512, %s30, [#allocation3]
    $region9: #{tpu_custom_call.1} parent=1 // pred_fallthru
      _
    // Predicated region
    $region10: #{tpu_custom_call.1} parent=1 // pred_check
      _
    $region11: #{tpu_custom_call.1} parent=1 // pred_check_branch
      %34 = sbr.rel (0) target = $region13
    $region12: #{tpu_custom_call.1} parent=1 // pred_region
      %s36 = ssub.s32 512, 512
      %37 = vsyncadd [#allocation8], %s36
      %s39 = sshll.u32 [#allocation7], 4
      %s40 = int_to_ptr.vmem [resolvable:$true] %s39
      %42 = dma.hbm_to_vmem [thread:$0]  %s2, 512, %s40, [#allocation8]
    $region13: #{tpu_custom_call.1} parent=1 // pred_fallthru
      _
    // Predicated region
    $region14: #{tpu_custom_call.1} parent=1 // pred_check
      _
    $region15: #{tpu_custom_call.1} parent=1 // pred_check_branch
      %44 = sbr.rel (0) target = $region17
    $region16: #{tpu_custom_call.1} parent=1 // pred_region
      %45 = dma.done [#allocation5], 16
    $region17: #{tpu_custom_call.1} parent=1 // pred_fallthru
      _
    // Predicated region
    $region18: #{tpu_custom_call.1} parent=1 // pred_check
      _
    $region19: #{tpu_custom_call.1} parent=1 // pred_check_branch
      %47 = sbr.rel (0) target = $region21
    $region20: #{tpu_custom_call.1} parent=1 // pred_region
      %48 = dma.done [#allocation3], 512
    $region21: #{tpu_custom_call.1} parent=1 // pred_fallthru
      _
    // Predicated region
    $region22: #{tpu_custom_call.1} parent=1 // pred_check
      _
    $region23: #{tpu_custom_call.1} parent=1 // pred_check_branch
      %50 = sbr.rel (0) target = $region25
    $region24: #{tpu_custom_call.1} parent=1 // pred_region
      %51 = dma.done [#allocation8], 512
    $region25: #{tpu_custom_call.1} parent=1 // pred_fallthru
      _
    %52 = sfence
    %s53 = sld [smem:[#allocation2]]
    %s54 = sld [smem:[#allocation2 + $0x1]]
    %v55 = vld [vmem:[#allocation6] sm:$0xff]
    %v56 = vld [vmem:[#allocation6 + $0x8] sm:$0xff]
    %v57 = vld [vmem:[#allocation6 + $0x10] sm:$0xff]
    %v58 = vld [vmem:[#allocation6 + $0x18] sm:$0xff]
    %v59 = vld [vmem:[#allocation7] sm:$0xff]
    %v60 = vld [vmem:[#allocation7 + $0x8] sm:$0xff]
    %v61 = vld [vmem:[#allocation7 + $0x10] sm:$0xff]
    %v62 = vld [vmem:[#allocation7 + $0x18] sm:$0xff]
    %v63 = vstv %s53
    %v64 = vmul.f32 %v63, %v55
    %v65 = vmul.f32 %v63, %v56
    %v66 = vmul.f32 %v63, %v57
    %v67 = vmul.f32 %v63, %v58
    %v68 = vstv %s54
    %v69 = vmul.f32 %v68, %v59
    %v70 = vmul.f32 %v68, %v60
    %v71 = vmul.f32 %v68, %v61
    %v72 = vmul.f32 %v68, %v62
    %v73 = vadd.f32 %v64, %v69
    %v74 = vadd.f32 %v65, %v70
    %v75 = vadd.f32 %v66, %v71
    %v76 = vadd.f32 %v67, %v72
    %77 = vst [vmem:[#allocation9] sm:$0xff] %v73
    %78 = vst [vmem:[#allocation9 + $0x8] sm:$0xff] %v74
    %79 = vst [vmem:[#allocation9 + $0x10] sm:$0xff] %v75
    %80 = vst [vmem:[#allocation9 + $0x18] sm:$0xff] %v76
    %v81 = vmul.f32 %v68, %v55
    %v82 = vmul.f32 %v68, %v56
    %v83 = vmul.f32 %v68, %v57
    %v84 = vmul.f32 %v68, %v58
    %v85 = vmul.f32 %v63, %v59
    %v86 = vmul.f32 %v63, %v60
    %v87 = vmul.f32 %v63, %v61
    %v88 = vmul.f32 %v63, %v62
    %v89 = vadd.f32 %v81, %v85
    %v90 = vadd.f32 %v82, %v86
    %v91 = vadd.f32 %v83, %v87
    %v92 = vadd.f32 %v84, %v88
    %93 = vst [vmem:[#allocation10] sm:$0xff] %v89
    %94 = vst [vmem:[#allocation10 + $0x8] sm:$0xff] %v90
    %95 = vst [vmem:[#allocation10 + $0x10] sm:$0xff] %v91
    %96 = vst [vmem:[#allocation10 + $0x18] sm:$0xff] %v92
    // Predicated region
    $region26: #{tpu_custom_call.1} parent=1 // pred_check
      _
    $region27: #{tpu_custom_call.1} parent=1 // pred_check_branch
      %98 = sbr.rel (0) target = $region29
    $region28: #{tpu_custom_call.1} parent=1 // pred_region
      %s100 = ssub.s32 512, 512
      %101 = vsyncadd [#allocation4], %s100
      %s103 = sshll.u32 [#allocation9], 4
      %s104 = int_to_ptr.vmem [resolvable:$true] %s103
      %106 = dma.vmem_to_hbm [thread:$0]  %s104, 512, %s3, [#allocation4]
    $region29: #{tpu_custom_call.1} parent=1 // pred_fallthru
      _
    // Predicated region
    $region30: #{tpu_custom_call.1} parent=1 // pred_check
      _
    $region31: #{tpu_custom_call.1} parent=1 // pred_check_branch
      %108 = sbr.rel (0) target = $region33
    $region32: #{tpu_custom_call.1} parent=1 // pred_region
      %s110 = ssub.s32 512, 512
      %111 = vsyncadd [#allocation11], %s110
      %s113 = sshll.u32 [#allocation10], 4
      %s114 = int_to_ptr.vmem [resolvable:$true] %s113
      %116 = dma.vmem_to_hbm [thread:$0]  %s114, 512, %s4, [#allocation11]
    $region33: #{tpu_custom_call.1} parent=1 // pred_fallthru
      _
    // Predicated region
    $region34: #{tpu_custom_call.1} parent=1 // pred_check
      _
    $region35: #{tpu_custom_call.1} parent=1 // pred_check_branch
      %118 = sbr.rel (0) target = $region37
    $region36: #{tpu_custom_call.1} parent=1 // pred_region
      %119 = dma.done [#allocation4], 512
    $region37: #{tpu_custom_call.1} parent=1 // pred_fallthru
      _
    // Predicated region
    $region38: #{tpu_custom_call.1} parent=1 // pred_check
      _
    $region39: #{tpu_custom_call.1} parent=1 // pred_check_branch
      %121 = sbr.rel (0) target = $region41
    $region40: #{tpu_custom_call.1} parent=1 // pred_region
      %122 = dma.done [#allocation11], 512
    $region41: #{tpu_custom_call.1} parent=1 // pred_fallthru
      _
    %123 = vsyncpa [#allocation3], 1
    %124 = vsyncpa [#allocation8], 1
    %125 = vsyncpa [#allocation4], 1
    %126 = vsyncpa [#allocation11], 1
    %127 = vsyncpa [#allocation5], 1

</llo_original>
